<compile_context>
chip_gen: v7x
topology: tpu7x:2x2x1
jax: 0.10.0
libtpu: 0.0.40
codegen_flags: <defaults>
</compile_context>

<pallas_src>
import functools
import math

import jax
import jax.numpy as jnp
from jax import lax
from jax.experimental import pallas as pl
from jax.experimental.pallas import tpu as pltpu

EPS = 1e-12  # matches torch F.normalize default eps


def _round_up(x, m):
    return (x + m - 1) // m * m


def _vmem_capacity_bytes():
    """Physical VMEM of the local TPU generation; conservative fallback."""
    try:
        info = pltpu.get_tpu_info()
        cap = getattr(info, "vmem_capacity_bytes", None)
        if cap:
            return int(cap)
    except Exception:
        pass
    return 64 << 20  # assume the smallest (v7x) if the query is unavailable


def _main_pass_vmem_need(tile, k, op_bytes, out_bytes):
    # double-buffered row + col operand blocks and double-buffered output tile
    return 2 * tile * k * op_bytes * 2 + 2 * tile * tile * out_bytes


def _choose_tile(n, k, op_bytes, out_bytes, vmem_budget):
    """Largest MXU-friendly tile that (a) keeps >=2 tiles per axis when the
    problem allows it (v7x: 2 TensorCores), (b) does not over-pad N, and
    (c) fits the generation-aware VMEM budget."""
    n128 = _round_up(max(n, 1), 128)
    best = 128
    for t in (256, 512):
        n_pad = _round_up(n, t)
        if n_pad // t < 2:                      # would leave a v7x TC idle
            continue
        if (n_pad - n128) * 4 > n128:           # >25% wasted padding rows
            continue
        if 2 * _main_pass_vmem_need(t, k, op_bytes, out_bytes) > vmem_budget:
            continue
        best = t
    return best


# ----------------------------- Pass 1: prologue ------------------------------
def _normalize_concat_kernel(w_ref, x_ref, z_ref, *, num_pers, dim):
    """z[:, p*D:(p+1)*D] = normalize(x * w[p], dim=-1) / sqrt(P), f32 math."""
    x = x_ref[...].astype(jnp.float32)                 # (TM, D)
    w = w_ref[...].astype(jnp.float32)                 # (P, D), tiny, resident
    inv_sqrt_p = jnp.float32(1.0 / math.sqrt(num_pers))
    for p in range(num_pers):                          # small static unroll
        a = x * w[p:p + 1, :]                          # (TM, D)
        # x / max(||x||, eps) == x * rsqrt(max(sum(x^2), eps^2))  (EUP rsqrt)
        inv = lax.rsqrt(jnp.maximum(jnp.sum(a * a, axis=-1, keepdims=True),
                                    jnp.float32(EPS * EPS)))
        z_ref[:, p * dim:(p + 1) * dim] = (a * (inv * inv_sqrt_p)).astype(z_ref.dtype)


# ----------------------------- Pass 2: main tile -----------------------------
def _attention_tile_kernel(zr_ref, zc_ref, out_ref):
    # (TM, K) x (TN, K) contracted on K (dim 1 of both) -> (TM, TN); no .T,
    # single full-K MXU matmul, f32 accumulation.
    s = lax.dot_general(zr_ref[...], zc_ref[...],
                        dimension_numbers=(((1,), (1,)), ((), ())),
                        preferred_element_type=jnp.float32)
    # mask = (att > 0); att * mask  ==  relu  (one VALU op)
    out_ref[...] = jnp.maximum(s, 0.0).astype(out_ref.dtype)


# --------------------------------- wrapper -----------------------------------
def graph_learner_forward(context, weight, *,
                          matmul_dtype=jnp.bfloat16,
                          out_dtype=jnp.float32):
    """context: (N, D), weight: (P, D) -> attention (N, N) in out_dtype.

    matmul_dtype is the dtype of the precomputed normalized operand Z fed to
    the MXU (bf16 runs at peak MXU rate on v5e/v6e/v7x; accumulation is f32).
    out_dtype=jnp.bfloat16 halves the N^2 HBM writeback if downstream allows.
    """
    n, d = context.shape
    p, d2 = weight.shape
    assert d == d2, "context / weight feature dims differ"
    k = p * d

    op_bytes = jnp.dtype(matmul_dtype).itemsize
    out_bytes = jnp.dtype(out_dtype).itemsize

    cap = _vmem_capacity_bytes()
    budget = min(int(cap * 0.65), 48 << 20)   # ~40 MiB on 64 MiB v7x parts

    tile = _choose_tile(n, k, op_bytes, out_bytes, budget)
    n_pad = _round_up(max(n, 1), tile)

    ctx = context.astype(jnp.float32)
    if n_pad != n:
        ctx = jnp.pad(ctx, ((0, n_pad - n), (0, 0)))   # zero rows -> zero Z rows

    # ---- Pass 1: normalized, 1/sqrt(P)-scaled, P-concatenated operand Z ----
    pre_tile = tile
    pre_need = (2 * pre_tile * d * 4 + 2 * pre_tile * k * op_bytes + p * d * 4)
    z = pl.pallas_call(
        functools.partial(_normalize_concat_kernel, num_pers=p, dim=d),
        out_shape=jax.ShapeDtypeStruct((n_pad, k), matmul_dtype),
        grid_spec=pltpu.PrefetchScalarGridSpec(
            num_scalar_prefetch=0,
            grid=(n_pad // pre_tile,),
            in_specs=[
                pl.BlockSpec((p, d), lambda i: (0, 0)),          # resident weight
                pl.BlockSpec((pre_tile, d), lambda i: (i, 0)),   # context rows
            ],
            out_specs=pl.BlockSpec((pre_tile, k), lambda i: (i, 0)),
        ),
        compiler_params=pltpu.CompilerParams(
            dimension_semantics=("parallel",),
            vmem_limit_bytes=max(16 << 20,
                                 min(2 * pre_need + (4 << 20), budget)),
        ),
    )(weight.astype(jnp.float32), ctx)

    # ---- Pass 2: ReLU(Z @ Z^T) over (tile, tile) output tiles ----
    grid = (n_pad // tile, n_pad // tile)
    need = _main_pass_vmem_need(tile, k, op_bytes, out_bytes)
    vmem_limit = max(16 << 20, min(2 * need + (4 << 20), budget))

    cost = pl.CostEstimate(
        flops=2 * n_pad * n_pad * k,
        transcendentals=0,
        bytes_accessed=(n_pad * n_pad * out_bytes
                        + 2 * grid[0] * n_pad * k * op_bytes),
    )

    att = pl.pallas_call(
        _attention_tile_kernel,
        out_shape=jax.ShapeDtypeStruct((n_pad, n_pad), out_dtype),
        grid_spec=pltpu.PrefetchScalarGridSpec(
            num_scalar_prefetch=0,
            grid=grid,
            in_specs=[
                pl.BlockSpec((tile, k), lambda i, j: (i, 0)),   # Z row block
                pl.BlockSpec((tile, k), lambda i, j: (j, 0)),   # Z col block
            ],
            out_specs=pl.BlockSpec((tile, tile), lambda i, j: (i, j)),
        ),
        compiler_params=pltpu.CompilerParams(
            dimension_semantics=("parallel", "parallel"),
            vmem_limit_bytes=vmem_limit,
        ),
        cost_estimate=cost,
    )(z, z)

    if n_pad != n:
        att = att[:n, :n]
    return att


# --------------------------------- reference ---------------------------------
def xavier_uniform(key, shape):
    # torch nn.init.xavier_uniform_ on a 2D (fan_out, fan_in) tensor, gain=1
    fan_out, fan_in = shape
    bound = (6.0 / (fan_in + fan_out)) ** 0.5
    return jax.random.uniform(key, shape, jnp.float32, minval=-bound, maxval=bound)


def reference_forward(context, weight):
    ctx_fc = context[None, :, :] * weight[:, None, :]
    norm = jnp.sqrt(jnp.sum(ctx_fc * ctx_fc, axis=-1, keepdims=True))
    ctx_n = ctx_fc / jnp.maximum(norm, EPS)
    att = jnp.einsum('pnd,pmd->pnm', ctx_n, ctx_n).mean(0)
    mask = (att > 0).astype(jnp.float32)
    return att * mask


if __name__ == "__main__":
    key = jax.random.PRNGKey(0)
    k_w, k_c, k_c2 = jax.random.split(key, 3)

    # Small shapes consistent with the module: N nodes, D = input_size, P = num_pers.
    N, D, P = 16, 32, 4
    weight = xavier_uniform(k_w, (P, D))
    context = jax.random.normal(k_c, (N, D), dtype=jnp.float32)
    ref = reference_forward(context, weight)

    # f32 MXU-operand path — strict check.
    out_f32 = graph_learner_forward(context, weight, matmul_dtype=jnp.float32)
    jax.block_until_ready(out_f32)
    assert out_f32.shape == (N, N) and out_f32.dtype == jnp.float32
    assert jnp.allclose(out_f32, ref, atol=1e-4, rtol=1e-4), "f32 mismatch vs reference"

    # Default bf16 MXU-operand path (peak MXU rate on all generations) — relaxed.
    out_bf16 = graph_learner_forward(context, weight)
    jax.block_until_ready(out_bf16)
    assert jnp.allclose(out_bf16, ref, atol=5e-2, rtol=5e-2), "bf16 mismatch vs reference"

    # Non-multiple-of-128 N exercises the padding path (no full-N fallback).
    N2 = 200
    context2 = jax.random.normal(k_c2, (N2, D), dtype=jnp.float32)
    ref2 = reference_forward(context2, weight)
    out2 = graph_learner_forward(context2, weight, matmul_dtype=jnp.float32)
    jax.block_until_ready(out2)
    assert out2.shape == (N2, N2)
    assert jnp.allclose(out2, ref2, atol=1e-4, rtol=1e-4), "padded-N mismatch vs reference"

    print("KERNEL_OK")
</pallas_src>

<mosaic_0001>
module attributes {stable_mosaic.version = 11 : i64} {
  func.func @_normalize_concat_kernel(%arg0: i32, %arg1: memref<4x32xf32, #tpu.memory_space<vmem>>, %arg2: memref<128x32xf32, #tpu.memory_space<vmem>>, %arg3: memref<128x128xf32, #tpu.memory_space<vmem>>) attributes {dimension_semantics = [#tpu.dimension_semantics<parallel>], iteration_bounds = array<i64: 1>, scalar_prefetch = 0 : i64, scratch_operands = 0 : i64, tpu.core_type = #tpu.core_type<tc>, window_params = [{pipeline_mode = #tpu.pipeline_mode<synchronous>, transform_indices = @transform_0, window_bounds = array<i64: 4, 32>}, {transform_indices = @transform_1, window_bounds = array<i64: 128, 32>}, {transform_indices = @transform_2, window_bounds = array<i64: 128, 128>}]} {
    %c0 = arith.constant 0 : index
    %c0_0 = arith.constant 0 : index
    %0 = vector.load %arg2[%c0, %c0_0] : memref<128x32xf32, #tpu.memory_space<vmem>>, vector<128x32xf32>
    %c0_1 = arith.constant 0 : index
    %c0_2 = arith.constant 0 : index
    %1 = vector.load %arg1[%c0_1, %c0_2] : memref<4x32xf32, #tpu.memory_space<vmem>>, vector<4x32xf32>
    %2 = vector.extract_strided_slice %1 {offsets = [0, 0], sizes = [1, 32], strides = [1, 1]} : vector<4x32xf32> to vector<1x32xf32>
    %3 = vector.broadcast %2 : vector<1x32xf32> to vector<128x32xf32>
    %4 = arith.mulf %0, %3 : vector<128x32xf32>
    %5 = arith.mulf %4, %4 : vector<128x32xf32>
    %cst = arith.constant dense<0.000000e+00> : vector<128xf32>
    %6 = vector.multi_reduction <add>, %5, %cst [1] : vector<128x32xf32> to vector<128xf32>
    %7 = vector.shape_cast %6 : vector<128xf32> to vector<128x1xf32>
    %cst_3 = arith.constant 1.000000e-24 : f32
    %8 = vector.broadcast %cst_3 : f32 to vector<128x1xf32>
    %9 = arith.maximumf %7, %8 : vector<128x1xf32>
    %10 = math.rsqrt %9 : vector<128x1xf32>
    %cst_4 = arith.constant 5.000000e-01 : f32
    %11 = vector.broadcast %cst_4 : f32 to vector<128x1xf32>
    %12 = arith.mulf %10, %11 : vector<128x1xf32>
    %13 = vector.broadcast %12 : vector<128x1xf32> to vector<128x32xf32>
    %14 = arith.mulf %4, %13 : vector<128x32xf32>
    %c0_5 = arith.constant 0 : index
    %c0_6 = arith.constant 0 : index
    %15 = vector.load %arg3[%c0_5, %c0_6] : memref<128x128xf32, #tpu.memory_space<vmem>>, vector<128x32xf32>
    tpu.vector_store %arg3[%c0_5, %c0_6], %14 {strides = array<i32>} : memref<128x128xf32, #tpu.memory_space<vmem>>, vector<128x32xf32>,
    %16 = vector.extract_strided_slice %1 {offsets = [1, 0], sizes = [1, 32], strides = [1, 1]} : vector<4x32xf32> to vector<1x32xf32>
    %17 = vector.broadcast %16 : vector<1x32xf32> to vector<128x32xf32>
    %18 = arith.mulf %0, %17 : vector<128x32xf32>
    %19 = arith.mulf %18, %18 : vector<128x32xf32>
    %cst_7 = arith.constant dense<0.000000e+00> : vector<128xf32>
    %20 = vector.multi_reduction <add>, %19, %cst_7 [1] : vector<128x32xf32> to vector<128xf32>
    %21 = vector.shape_cast %20 : vector<128xf32> to vector<128x1xf32>
    %cst_8 = arith.constant 1.000000e-24 : f32
    %22 = vector.broadcast %cst_8 : f32 to vector<128x1xf32>
    %23 = arith.maximumf %21, %22 : vector<128x1xf32>
    %24 = math.rsqrt %23 : vector<128x1xf32>
    %cst_9 = arith.constant 5.000000e-01 : f32
    %25 = vector.broadcast %cst_9 : f32 to vector<128x1xf32>
    %26 = arith.mulf %24, %25 : vector<128x1xf32>
    %27 = vector.broadcast %26 : vector<128x1xf32> to vector<128x32xf32>
    %28 = arith.mulf %18, %27 : vector<128x32xf32>
    %c0_10 = arith.constant 0 : index
    %c32 = arith.constant 32 : index
    %29 = vector.load %arg3[%c0_10, %c32] : memref<128x128xf32, #tpu.memory_space<vmem>>, vector<128x32xf32>
    tpu.vector_store %arg3[%c0_10, %c32], %28 {strides = array<i32>} : memref<128x128xf32, #tpu.memory_space<vmem>>, vector<128x32xf32>,
    %30 = vector.extract_strided_slice %1 {offsets = [2, 0], sizes = [1, 32], strides = [1, 1]} : vector<4x32xf32> to vector<1x32xf32>
    %31 = vector.broadcast %30 : vector<1x32xf32> to vector<128x32xf32>
    %32 = arith.mulf %0, %31 : vector<128x32xf32>
    %33 = arith.mulf %32, %32 : vector<128x32xf32>
    %cst_11 = arith.constant dense<0.000000e+00> : vector<128xf32>
    %34 = vector.multi_reduction <add>, %33, %cst_11 [1] : vector<128x32xf32> to vector<128xf32>
    %35 = vector.shape_cast %34 : vector<128xf32> to vector<128x1xf32>
    %cst_12 = arith.constant 1.000000e-24 : f32
    %36 = vector.broadcast %cst_12 : f32 to vector<128x1xf32>
    %37 = arith.maximumf %35, %36 : vector<128x1xf32>
    %38 = math.rsqrt %37 : vector<128x1xf32>
    %cst_13 = arith.constant 5.000000e-01 : f32
    %39 = vector.broadcast %cst_13 : f32 to vector<128x1xf32>
    %40 = arith.mulf %38, %39 : vector<128x1xf32>
    %41 = vector.broadcast %40 : vector<128x1xf32> to vector<128x32xf32>
    %42 = arith.mulf %32, %41 : vector<128x32xf32>
    %c0_14 = arith.constant 0 : index
    %c64 = arith.constant 64 : index
    %43 = vector.load %arg3[%c0_14, %c64] : memref<128x128xf32, #tpu.memory_space<vmem>>, vector<128x32xf32>
    tpu.vector_store %arg3[%c0_14, %c64], %42 {strides = array<i32>} : memref<128x128xf32, #tpu.memory_space<vmem>>, vector<128x32xf32>,
    %44 = vector.extract_strided_slice %1 {offsets = [3, 0], sizes = [1, 32], strides = [1, 1]} : vector<4x32xf32> to vector<1x32xf32>
    %45 = vector.broadcast %44 : vector<1x32xf32> to vector<128x32xf32>
    %46 = arith.mulf %0, %45 : vector<128x32xf32>
    %47 = arith.mulf %46, %46 : vector<128x32xf32>
    %cst_15 = arith.constant dense<0.000000e+00> : vector<128xf32>
    %48 = vector.multi_reduction <add>, %47, %cst_15 [1] : vector<128x32xf32> to vector<128xf32>
    %49 = vector.shape_cast %48 : vector<128xf32> to vector<128x1xf32>
    %cst_16 = arith.constant 1.000000e-24 : f32
    %50 = vector.broadcast %cst_16 : f32 to vector<128x1xf32>
    %51 = arith.maximumf %49, %50 : vector<128x1xf32>
    %52 = math.rsqrt %51 : vector<128x1xf32>
    %cst_17 = arith.constant 5.000000e-01 : f32
    %53 = vector.broadcast %cst_17 : f32 to vector<128x1xf32>
    %54 = arith.mulf %52, %53 : vector<128x1xf32>
    %55 = vector.broadcast %54 : vector<128x1xf32> to vector<128x32xf32>
    %56 = arith.mulf %46, %55 : vector<128x32xf32>
    %c0_18 = arith.constant 0 : index
    %c96 = arith.constant 96 : index
    %57 = vector.load %arg3[%c0_18, %c96] : memref<128x128xf32, #tpu.memory_space<vmem>>, vector<128x32xf32>
    tpu.vector_store %arg3[%c0_18, %c96], %56 {strides = array<i32>} : memref<128x128xf32, #tpu.memory_space<vmem>>, vector<128x32xf32>,
    return
  }
  func.func @transform_0(%arg0: i32) -> (i32, i32) {
    %c0_i32 = arith.constant 0 : i32
    %c0_i32_0 = arith.constant 0 : i32
    %c0_i32_1 = arith.constant 0 : i32
    return %c0_i32, %c0_i32_0 : i32, i32
  }
  func.func @transform_1(%arg0: i32) -> (i32, i32) {
    %c0_i32 = arith.constant 0 : i32
    %c0_i32_0 = arith.constant 0 : i32
    return %arg0, %c0_i32 : i32, i32
  }
  func.func @transform_2(%arg0: i32) -> (i32, i32) {
    %c0_i32 = arith.constant 0 : i32
    %c0_i32_0 = arith.constant 0 : i32
    return %arg0, %c0_i32 : i32, i32
  }
}

</mosaic_0001>

<llo_original>
// kernel: tpu_custom_call.1
$region0: #{tpu_custom_call.1}
  #allocation0 [shape = 'u32[]', space=smem, size = 0x4, offset = 0x4, fixed_abs, tag = 'smem constant byte address 0x4 - core index']
  #allocation1 [shape = 'u32[144,128]{1,0:T(1,128)}', space=vmem, size = 0x12000, scoped, tag = 'internal scratch']
  %s0 = inlined_call_operand.vmem [shape: f32[4,32], index: 0, kind: input, shape index: {}]
  %s1 = inlined_call_operand.vmem [shape: f32[128,32], index: 1, kind: input, shape index: {}]
  %s2 = inlined_call_operand.hbm [shape: f32[128,128], index: 2, kind: output, shape index: {}]
  %s3 = sld [smem:[#allocation0]]
  $region18: #{tpu_custom_call.1} parent=0
    _
  %s5 = ssub.s32 1, %s3
  %s6 = scalar_select 0, %s5, %s3
  $region1: #{tpu_custom_call.1} parent=0
    #allocation2 [shape = 'u8[65536]{0}', space=vmem, size = 0x10000, scoped, tag = 'output window, operand 0, single buffered']
    #allocation3 [shape = 's32[1]{0}', space=sflag, size = 0x4, scoped, tag = 'scoped memory for tpu_custom_call.1']
    %7 = vsyncpa [#allocation3], 0
    // Predicated region
    $region2: #{tpu_custom_call.1} parent=1 // pred_check
      _
    $region3: #{tpu_custom_call.1} parent=1 // pred_check_branch
      %9 = sbr.rel (0) target = $region5
    $region4: #{tpu_custom_call.1} parent=1 // pred_region
      _
    $region5: #{tpu_custom_call.1} parent=1 // pred_fallthru
      _
    // Predicated region
    $region6: #{tpu_custom_call.1} parent=1 // pred_check
      _
    $region7: #{tpu_custom_call.1} parent=1 // pred_check_branch
      %11 = sbr.rel (0) target = $region9
    $region8: #{tpu_custom_call.1} parent=1 // pred_region
      _
    $region9: #{tpu_custom_call.1} parent=1 // pred_fallthru
      _
    %v12 = vld [vmem:[%s1] sm:$0xff]
    %v13 = vld [vmem:[%s1 + $0x8] sm:$0xff]
    %v14 = vld [vmem:[%s1 + $0x10] sm:$0xff]
    %v15 = vld [vmem:[%s1 + $0x18] sm:$0xff]
    %v16 = vld [vmem:[%s1 + $0x20] sm:$0xff]
    %v17 = vld [vmem:[%s1 + $0x28] sm:$0xff]
    %v18 = vld [vmem:[%s1 + $0x30] sm:$0xff]
    %v19 = vld [vmem:[%s1 + $0x38] sm:$0xff]
    %v20 = vld [vmem:[%s1 + $0x40] sm:$0xff]
    %v21 = vld [vmem:[%s1 + $0x48] sm:$0xff]
    %v22 = vld [vmem:[%s1 + $0x50] sm:$0xff]
    %v23 = vld [vmem:[%s1 + $0x58] sm:$0xff]
    %v24 = vld [vmem:[%s1 + $0x60] sm:$0xff]
    %v25 = vld [vmem:[%s1 + $0x68] sm:$0xff]
    %v26 = vld [vmem:[%s1 + $0x70] sm:$0xff]
    %v27 = vld [vmem:[%s1 + $0x78] sm:$0xff]
    %v28 = vld [vmem:[%s0] sm:$0xf]
    %v29 = vlaneseq
    %v30 = vshrl.u32 %v29, 7
    %v31 = vsub.s32 0, %v30
    %v32 = vrot.slane %v28, %v31
    %v33 = vmul.f32 %v12, %v32
    %v34 = vmul.f32 %v13, %v32
    %v35 = vmul.f32 %v14, %v32
    %v36 = vmul.f32 %v15, %v32
    %v37 = vmul.f32 %v16, %v32
    %v38 = vmul.f32 %v17, %v32
    %v39 = vmul.f32 %v18, %v32
    %v40 = vmul.f32 %v19, %v32
    %v41 = vmul.f32 %v20, %v32
    %v42 = vmul.f32 %v21, %v32
    %v43 = vmul.f32 %v22, %v32
    %v44 = vmul.f32 %v23, %v32
    %v45 = vmul.f32 %v24, %v32
    %v46 = vmul.f32 %v25, %v32
    %v47 = vmul.f32 %v26, %v32
    %v48 = vmul.f32 %v27, %v32
    %v49 = vmul.f32 %v33, %v33
    %v50 = vmul.f32 %v34, %v34
    %v51 = vmul.f32 %v35, %v35
    %v52 = vmul.f32 %v36, %v36
    %v53 = vmul.f32 %v37, %v37
    %v54 = vmul.f32 %v38, %v38
    %v55 = vmul.f32 %v39, %v39
    %v56 = vmul.f32 %v40, %v40
    %v57 = vmul.f32 %v41, %v41
    %v58 = vmul.f32 %v42, %v42
    %v59 = vmul.f32 %v43, %v43
    %v60 = vmul.f32 %v44, %v44
    %v61 = vmul.f32 %v45, %v45
    %v62 = vmul.f32 %v46, %v46
    %v63 = vmul.f32 %v47, %v47
    %v64 = vmul.f32 %v48, %v48
    %vm65 = vcmask 261120
    %v66 = vsel %vm65, %v49, 0.0
    %67 = vadd.xlane.f32.xlu0 %v66
    %v68 = vpop.xlane.xlu0 %67
    %v69 = vsel %vm65, %v50, 0.0
    %70 = vadd.xlane.f32.xlu0 %v69
    %v71 = vpop.xlane.xlu0 %70
    %v72 = vsel %vm65, %v51, 0.0
    %73 = vadd.xlane.f32.xlu0 %v72
    %v74 = vpop.xlane.xlu0 %73
    %v75 = vsel %vm65, %v52, 0.0
    %76 = vadd.xlane.f32.xlu0 %v75
    %v77 = vpop.xlane.xlu0 %76
    %v78 = vsel %vm65, %v53, 0.0
    %79 = vadd.xlane.f32.xlu0 %v78
    %v80 = vpop.xlane.xlu0 %79
    %v81 = vsel %vm65, %v54, 0.0
    %82 = vadd.xlane.f32.xlu0 %v81
    %v83 = vpop.xlane.xlu0 %82
    %v84 = vsel %vm65, %v55, 0.0
    %85 = vadd.xlane.f32.xlu0 %v84
    %v86 = vpop.xlane.xlu0 %85
    %v87 = vsel %vm65, %v56, 0.0
    %88 = vadd.xlane.f32.xlu0 %v87
    %v89 = vpop.xlane.xlu0 %88
    %v90 = vsel %vm65, %v57, 0.0
    %91 = vadd.xlane.f32.xlu0 %v90
    %v92 = vpop.xlane.xlu0 %91
    %v93 = vsel %vm65, %v58, 0.0
    %94 = vadd.xlane.f32.xlu0 %v93
    %v95 = vpop.xlane.xlu0 %94
    %v96 = vsel %vm65, %v59, 0.0
    %97 = vadd.xlane.f32.xlu0 %v96
    %v98 = vpop.xlane.xlu0 %97
    %v99 = vsel %vm65, %v60, 0.0
    %100 = vadd.xlane.f32.xlu0 %v99
    %v101 = vpop.xlane.xlu0 %100
    %v102 = vsel %vm65, %v61, 0.0
    %103 = vadd.xlane.f32.xlu0 %v102
    %v104 = vpop.xlane.xlu0 %103
    %v105 = vsel %vm65, %v62, 0.0
    %106 = vadd.xlane.f32.xlu0 %v105
    %v107 = vpop.xlane.xlu0 %106
    %v108 = vsel %vm65, %v63, 0.0
    %109 = vadd.xlane.f32.xlu0 %v108
    %v110 = vpop.xlane.xlu0 %109
    %v111 = vsel %vm65, %v64, 0.0
    %112 = vadd.xlane.f32.xlu0 %v111
    %v113 = vpop.xlane.xlu0 %112
    %v114 = vmax.f32 %v68, 1e-24
    %v115 = vmax.f32 %v71, 1e-24
    %v116 = vmax.f32 %v74, 1e-24
    %v117 = vmax.f32 %v77, 1e-24
    %v118 = vmax.f32 %v80, 1e-24
    %v119 = vmax.f32 %v83, 1e-24
    %v120 = vmax.f32 %v86, 1e-24
    %v121 = vmax.f32 %v89, 1e-24
    %v122 = vmax.f32 %v92, 1e-24
    %v123 = vmax.f32 %v95, 1e-24
    %v124 = vmax.f32 %v98, 1e-24
    %v125 = vmax.f32 %v101, 1e-24
    %v126 = vmax.f32 %v104, 1e-24
    %v127 = vmax.f32 %v107, 1e-24
    %v128 = vmax.f32 %v110, 1e-24
    %v129 = vmax.f32 %v113, 1e-24
    %v130 = vrsqrt.pop %v114
    %v131 = vrsqrt.pop %v115
    %v132 = vrsqrt.pop %v116
    %v133 = vrsqrt.pop %v117
    %v134 = vrsqrt.pop %v118
    %v135 = vrsqrt.pop %v119
    %v136 = vrsqrt.pop %v120
    %v137 = vrsqrt.pop %v121
    %v138 = vrsqrt.pop %v122
    %v139 = vrsqrt.pop %v123
    %v140 = vrsqrt.pop %v124
    %v141 = vrsqrt.pop %v125
    %v142 = vrsqrt.pop %v126
    %v143 = vrsqrt.pop %v127
    %v144 = vrsqrt.pop %v128
    %v145 = vrsqrt.pop %v129
    %v146 = vmul.f32 %v130, 0.5
    %v147 = vmul.f32 %v131, 0.5
    %v148 = vmul.f32 %v132, 0.5
    %v149 = vmul.f32 %v133, 0.5
    %v150 = vmul.f32 %v134, 0.5
    %v151 = vmul.f32 %v135, 0.5
    %v152 = vmul.f32 %v136, 0.5
    %v153 = vmul.f32 %v137, 0.5
    %v154 = vmul.f32 %v138, 0.5
    %v155 = vmul.f32 %v139, 0.5
    %v156 = vmul.f32 %v140, 0.5
    %v157 = vmul.f32 %v141, 0.5
    %v158 = vmul.f32 %v142, 0.5
    %v159 = vmul.f32 %v143, 0.5
    %v160 = vmul.f32 %v144, 0.5
    %v161 = vmul.f32 %v145, 0.5
    %v162 = vmul.f32 %v33, %v146
    %v163 = vmul.f32 %v34, %v147
    %v164 = vmul.f32 %v35, %v148
    %v165 = vmul.f32 %v36, %v149
    %v166 = vmul.f32 %v37, %v150
    %v167 = vmul.f32 %v38, %v151
    %v168 = vmul.f32 %v39, %v152
    %v169 = vmul.f32 %v40, %v153
    %v170 = vmul.f32 %v41, %v154
    %v171 = vmul.f32 %v42, %v155
    %v172 = vmul.f32 %v43, %v156
    %v173 = vmul.f32 %v44, %v157
    %v174 = vmul.f32 %v45, %v158
    %v175 = vmul.f32 %v46, %v159
    %v176 = vmul.f32 %v47, %v160
    %v177 = vmul.f32 %v48, %v161
    %178 = vst.msk [vmem:[#allocation2] sm:$0xff] %vm65, %v162
    %179 = vst.msk [vmem:[#allocation2 + $0x8] sm:$0xff] %vm65, %v163
    %180 = vst.msk [vmem:[#allocation2 + $0x10] sm:$0xff] %vm65, %v164
    %181 = vst.msk [vmem:[#allocation2 + $0x18] sm:$0xff] %vm65, %v165
    %182 = vst.msk [vmem:[#allocation2 + $0x20] sm:$0xff] %vm65, %v166
    %183 = vst.msk [vmem:[#allocation2 + $0x28] sm:$0xff] %vm65, %v167
    %184 = vst.msk [vmem:[#allocation2 + $0x30] sm:$0xff] %vm65, %v168
    %185 = vst.msk [vmem:[#allocation2 + $0x38] sm:$0xff] %vm65, %v169
    %186 = vst.msk [vmem:[#allocation2 + $0x40] sm:$0xff] %vm65, %v170
    %187 = vst.msk [vmem:[#allocation2 + $0x48] sm:$0xff] %vm65, %v171
    %188 = vst.msk [vmem:[#allocation2 + $0x50] sm:$0xff] %vm65, %v172
    %189 = vst.msk [vmem:[#allocation2 + $0x58] sm:$0xff] %vm65, %v173
    %190 = vst.msk [vmem:[#allocation2 + $0x60] sm:$0xff] %vm65, %v174
    %191 = vst.msk [vmem:[#allocation2 + $0x68] sm:$0xff] %vm65, %v175
    %192 = vst.msk [vmem:[#allocation2 + $0x70] sm:$0xff] %vm65, %v176
    %193 = vst.msk [vmem:[#allocation2 + $0x78] sm:$0xff] %vm65, %v177
    %v194 = vlaneseq
    %v195 = vshrl.u32 %v194, 7
    %v196 = vsub.s32 1, %v195
    %v197 = vrot.slane %v28, %v196
    %v198 = vmul.f32 %v12, %v197
    %v199 = vmul.f32 %v13, %v197
    %v200 = vmul.f32 %v14, %v197
    %v201 = vmul.f32 %v15, %v197
    %v202 = vmul.f32 %v16, %v197
    %v203 = vmul.f32 %v17, %v197
    %v204 = vmul.f32 %v18, %v197
    %v205 = vmul.f32 %v19, %v197
    %v206 = vmul.f32 %v20, %v197
    %v207 = vmul.f32 %v21, %v197
    %v208 = vmul.f32 %v22, %v197
    %v209 = vmul.f32 %v23, %v197
    %v210 = vmul.f32 %v24, %v197
    %v211 = vmul.f32 %v25, %v197
    %v212 = vmul.f32 %v26, %v197
    %v213 = vmul.f32 %v27, %v197
    %v214 = vmul.f32 %v198, %v198
    %v215 = vmul.f32 %v199, %v199
    %v216 = vmul.f32 %v200, %v200
    %v217 = vmul.f32 %v201, %v201
    %v218 = vmul.f32 %v202, %v202
    %v219 = vmul.f32 %v203, %v203
    %v220 = vmul.f32 %v204, %v204
    %v221 = vmul.f32 %v205, %v205
    %v222 = vmul.f32 %v206, %v206
    %v223 = vmul.f32 %v207, %v207
    %v224 = vmul.f32 %v208, %v208
    %v225 = vmul.f32 %v209, %v209
    %v226 = vmul.f32 %v210, %v210
    %v227 = vmul.f32 %v211, %v211
    %v228 = vmul.f32 %v212, %v212
    %v229 = vmul.f32 %v213, %v213
    %v230 = vsel %vm65, %v214, 0.0
    %231 = vadd.xlane.f32.xlu0 %v230
    %v232 = vpop.xlane.xlu0 %231
    %v233 = vsel %vm65, %v215, 0.0
    %234 = vadd.xlane.f32.xlu0 %v233
    %v235 = vpop.xlane.xlu0 %234
    %v236 = vsel %vm65, %v216, 0.0
    %237 = vadd.xlane.f32.xlu0 %v236
    %v238 = vpop.xlane.xlu0 %237
    %v239 = vsel %vm65, %v217, 0.0
    %240 = vadd.xlane.f32.xlu0 %v239
    %v241 = vpop.xlane.xlu0 %240
    %v242 = vsel %vm65, %v218, 0.0
    %243 = vadd.xlane.f32.xlu0 %v242
    %v244 = vpop.xlane.xlu0 %243
    %v245 = vsel %vm65, %v219, 0.0
    %246 = vadd.xlane.f32.xlu0 %v245
    %v247 = vpop.xlane.xlu0 %246
    %v248 = vsel %vm65, %v220, 0.0
    %249 = vadd.xlane.f32.xlu0 %v248
    %v250 = vpop.xlane.xlu0 %249
    %v251 = vsel %vm65, %v221, 0.0
    %252 = vadd.xlane.f32.xlu0 %v251
    %v253 = vpop.xlane.xlu0 %252
    %v254 = vsel %vm65, %v222, 0.0
    %255 = vadd.xlane.f32.xlu0 %v254
    %v256 = vpop.xlane.xlu0 %255
    %v257 = vsel %vm65, %v223, 0.0
    %258 = vadd.xlane.f32.xlu0 %v257
    %v259 = vpop.xlane.xlu0 %258
    %v260 = vsel %vm65, %v224, 0.0
    %261 = vadd.xlane.f32.xlu0 %v260
    %v262 = vpop.xlane.xlu0 %261
    %v263 = vsel %vm65, %v225, 0.0
    %264 = vadd.xlane.f32.xlu0 %v263
    %v265 = vpop.xlane.xlu0 %264
    %v266 = vsel %vm65, %v226, 0.0
    %267 = vadd.xlane.f32.xlu0 %v266
    %v268 = vpop.xlane.xlu0 %267
    %v269 = vsel %vm65, %v227, 0.0
    %270 = vadd.xlane.f32.xlu0 %v269
    %v271 = vpop.xlane.xlu0 %270
    %v272 = vsel %vm65, %v228, 0.0
    %273 = vadd.xlane.f32.xlu0 %v272
    %v274 = vpop.xlane.xlu0 %273
    %v275 = vsel %vm65, %v229, 0.0
    %276 = vadd.xlane.f32.xlu0 %v275
    %v277 = vpop.xlane.xlu0 %276
    %v278 = vmax.f32 %v232, 1e-24
    %v279 = vmax.f32 %v235, 1e-24
    %v280 = vmax.f32 %v238, 1e-24
    %v281 = vmax.f32 %v241, 1e-24
    %v282 = vmax.f32 %v244, 1e-24
    %v283 = vmax.f32 %v247, 1e-24
    %v284 = vmax.f32 %v250, 1e-24
    %v285 = vmax.f32 %v253, 1e-24
    %v286 = vmax.f32 %v256, 1e-24
    %v287 = vmax.f32 %v259, 1e-24
    %v288 = vmax.f32 %v262, 1e-24
    %v289 = vmax.f32 %v265, 1e-24
    %v290 = vmax.f32 %v268, 1e-24
    %v291 = vmax.f32 %v271, 1e-24
    %v292 = vmax.f32 %v274, 1e-24
    %v293 = vmax.f32 %v277, 1e-24
    %v294 = vrsqrt.pop %v278
    %v295 = vrsqrt.pop %v279
    %v296 = vrsqrt.pop %v280
    %v297 = vrsqrt.pop %v281
    %v298 = vrsqrt.pop %v282
    %v299 = vrsqrt.pop %v283
    %v300 = vrsqrt.pop %v284
    %v301 = vrsqrt.pop %v285
    %v302 = vrsqrt.pop %v286
    %v303 = vrsqrt.pop %v287
    %v304 = vrsqrt.pop %v288
    %v305 = vrsqrt.pop %v289
    %v306 = vrsqrt.pop %v290
    %v307 = vrsqrt.pop %v291
    %v308 = vrsqrt.pop %v292
    %v309 = vrsqrt.pop %v293
    %v310 = vmul.f32 %v294, 0.5
    %v311 = vmul.f32 %v295, 0.5
    %v312 = vmul.f32 %v296, 0.5
    %v313 = vmul.f32 %v297, 0.5
    %v314 = vmul.f32 %v298, 0.5
    %v315 = vmul.f32 %v299, 0.5
    %v316 = vmul.f32 %v300, 0.5
    %v317 = vmul.f32 %v301, 0.5
    %v318 = vmul.f32 %v302, 0.5
    %v319 = vmul.f32 %v303, 0.5
    %v320 = vmul.f32 %v304, 0.5
    %v321 = vmul.f32 %v305, 0.5
    %v322 = vmul.f32 %v306, 0.5
    %v323 = vmul.f32 %v307, 0.5
    %v324 = vmul.f32 %v308, 0.5
    %v325 = vmul.f32 %v309, 0.5
    %v326 = vmul.f32 %v198, %v310
    %v327 = vmul.f32 %v199, %v311
    %v328 = vmul.f32 %v200, %v312
    %v329 = vmul.f32 %v201, %v313
    %v330 = vmul.f32 %v202, %v314
    %v331 = vmul.f32 %v203, %v315
    %v332 = vmul.f32 %v204, %v316
    %v333 = vmul.f32 %v205, %v317
    %v334 = vmul.f32 %v206, %v318
    %v335 = vmul.f32 %v207, %v319
    %v336 = vmul.f32 %v208, %v320
    %v337 = vmul.f32 %v209, %v321
    %v338 = vmul.f32 %v210, %v322
    %v339 = vmul.f32 %v211, %v323
    %v340 = vmul.f32 %v212, %v324
    %v341 = vmul.f32 %v213, %v325
    %358 = vrot.lane.b32.xlu0 %v326, 32
    %v359 = vpop.permute.xlu0 %358
    %360 = vrot.lane.b32.xlu0 %v327, 32
    %v361 = vpop.permute.xlu0 %360
    %362 = vrot.lane.b32.xlu0 %v328, 32
    %v363 = vpop.permute.xlu0 %362
    %364 = vrot.lane.b32.xlu0 %v329, 32
    %v365 = vpop.permute.xlu0 %364
    %366 = vrot.lane.b32.xlu0 %v330, 32
    %v367 = vpop.permute.xlu0 %366
    %368 = vrot.lane.b32.xlu0 %v331, 32
    %v369 = vpop.permute.xlu0 %368
    %370 = vrot.lane.b32.xlu0 %v332, 32
    %v371 = vpop.permute.xlu0 %370
    %372 = vrot.lane.b32.xlu0 %v333, 32
    %v373 = vpop.permute.xlu0 %372
    %374 = vrot.lane.b32.xlu0 %v334, 32
    %v375 = vpop.permute.xlu0 %374
    %376 = vrot.lane.b32.xlu0 %v335, 32
    %v377 = vpop.permute.xlu0 %376
    %378 = vrot.lane.b32.xlu0 %v336, 32
    %v379 = vpop.permute.xlu0 %378
    %380 = vrot.lane.b32.xlu0 %v337, 32
    %v381 = vpop.permute.xlu0 %380
    %382 = vrot.lane.b32.xlu0 %v338, 32
    %v383 = vpop.permute.xlu0 %382
    %384 = vrot.lane.b32.xlu0 %v339, 32
    %v385 = vpop.permute.xlu0 %384
    %386 = vrot.lane.b32.xlu0 %v340, 32
    %v387 = vpop.permute.xlu0 %386
    %388 = vrot.lane.b32.xlu0 %v341, 32
    %v389 = vpop.permute.xlu0 %388
    %vm406 = vcmask 523520
    %407 = vst.msk [vmem:[#allocation2] sm:$0xff] %vm406, %v359
    %408 = vst.msk [vmem:[#allocation2 + $0x8] sm:$0xff] %vm406, %v361
    %409 = vst.msk [vmem:[#allocation2 + $0x10] sm:$0xff] %vm406, %v363
    %410 = vst.msk [vmem:[#allocation2 + $0x18] sm:$0xff] %vm406, %v365
    %411 = vst.msk [vmem:[#allocation2 + $0x20] sm:$0xff] %vm406, %v367
    %412 = vst.msk [vmem:[#allocation2 + $0x28] sm:$0xff] %vm406, %v369
    %413 = vst.msk [vmem:[#allocation2 + $0x30] sm:$0xff] %vm406, %v371
    %414 = vst.msk [vmem:[#allocation2 + $0x38] sm:$0xff] %vm406, %v373
    %415 = vst.msk [vmem:[#allocation2 + $0x40] sm:$0xff] %vm406, %v375
    %416 = vst.msk [vmem:[#allocation2 + $0x48] sm:$0xff] %vm406, %v377
    %417 = vst.msk [vmem:[#allocation2 + $0x50] sm:$0xff] %vm406, %v379
    %418 = vst.msk [vmem:[#allocation2 + $0x58] sm:$0xff] %vm406, %v381
    %419 = vst.msk [vmem:[#allocation2 + $0x60] sm:$0xff] %vm406, %v383
    %420 = vst.msk [vmem:[#allocation2 + $0x68] sm:$0xff] %vm406, %v385
    %421 = vst.msk [vmem:[#allocation2 + $0x70] sm:$0xff] %vm406, %v387
    %422 = vst.msk [vmem:[#allocation2 + $0x78] sm:$0xff] %vm406, %v389
    %v423 = vlaneseq
    %v424 = vshrl.u32 %v423, 7
    %v425 = vsub.s32 2, %v424
    %v426 = vrot.slane %v28, %v425
    %v427 = vmul.f32 %v12, %v426
    %v428 = vmul.f32 %v13, %v426
    %v429 = vmul.f32 %v14, %v426
    %v430 = vmul.f32 %v15, %v426
    %v431 = vmul.f32 %v16, %v426
    %v432 = vmul.f32 %v17, %v426
    %v433 = vmul.f32 %v18, %v426
    %v434 = vmul.f32 %v19, %v426
    %v435 = vmul.f32 %v20, %v426
    %v436 = vmul.f32 %v21, %v426
    %v437 = vmul.f32 %v22, %v426
    %v438 = vmul.f32 %v23, %v426
    %v439 = vmul.f32 %v24, %v426
    %v440 = vmul.f32 %v25, %v426
    %v441 = vmul.f32 %v26, %v426
    %v442 = vmul.f32 %v27, %v426
    %v443 = vmul.f32 %v427, %v427
    %v444 = vmul.f32 %v428, %v428
    %v445 = vmul.f32 %v429, %v429
    %v446 = vmul.f32 %v430, %v430
    %v447 = vmul.f32 %v431, %v431
    %v448 = vmul.f32 %v432, %v432
    %v449 = vmul.f32 %v433, %v433
    %v450 = vmul.f32 %v434, %v434
    %v451 = vmul.f32 %v435, %v435
    %v452 = vmul.f32 %v436, %v436
    %v453 = vmul.f32 %v437, %v437
    %v454 = vmul.f32 %v438, %v438
    %v455 = vmul.f32 %v439, %v439
    %v456 = vmul.f32 %v440, %v440
    %v457 = vmul.f32 %v441, %v441
    %v458 = vmul.f32 %v442, %v442
    %v459 = vsel %vm65, %v443, 0.0
    %460 = vadd.xlane.f32.xlu0 %v459
    %v461 = vpop.xlane.xlu0 %460
    %v462 = vsel %vm65, %v444, 0.0
    %463 = vadd.xlane.f32.xlu0 %v462
    %v464 = vpop.xlane.xlu0 %463
    %v465 = vsel %vm65, %v445, 0.0
    %466 = vadd.xlane.f32.xlu0 %v465
    %v467 = vpop.xlane.xlu0 %466
    %v468 = vsel %vm65, %v446, 0.0
    %469 = vadd.xlane.f32.xlu0 %v468
    %v470 = vpop.xlane.xlu0 %469
    %v471 = vsel %vm65, %v447, 0.0
    %472 = vadd.xlane.f32.xlu0 %v471
    %v473 = vpop.xlane.xlu0 %472
    %v474 = vsel %vm65, %v448, 0.0
    %475 = vadd.xlane.f32.xlu0 %v474
    %v476 = vpop.xlane.xlu0 %475
    %v477 = vsel %vm65, %v449, 0.0
    %478 = vadd.xlane.f32.xlu0 %v477
    %v479 = vpop.xlane.xlu0 %478
    %v480 = vsel %vm65, %v450, 0.0
    %481 = vadd.xlane.f32.xlu0 %v480
    %v482 = vpop.xlane.xlu0 %481
    %v483 = vsel %vm65, %v451, 0.0
    %484 = vadd.xlane.f32.xlu0 %v483
    %v485 = vpop.xlane.xlu0 %484
    %v486 = vsel %vm65, %v452, 0.0
    %487 = vadd.xlane.f32.xlu0 %v486
    %v488 = vpop.xlane.xlu0 %487
    %v489 = vsel %vm65, %v453, 0.0
    %490 = vadd.xlane.f32.xlu0 %v489
    %v491 = vpop.xlane.xlu0 %490
    %v492 = vsel %vm65, %v454, 0.0
    %493 = vadd.xlane.f32.xlu0 %v492
    %v494 = vpop.xlane.xlu0 %493
    %v495 = vsel %vm65, %v455, 0.0
    %496 = vadd.xlane.f32.xlu0 %v495
    %v497 = vpop.xlane.xlu0 %496
    %v498 = vsel %vm65, %v456, 0.0
    %499 = vadd.xlane.f32.xlu0 %v498
    %v500 = vpop.xlane.xlu0 %499
    %v501 = vsel %vm65, %v457, 0.0
    %502 = vadd.xlane.f32.xlu0 %v501
    %v503 = vpop.xlane.xlu0 %502
    %v504 = vsel %vm65, %v458, 0.0
    %505 = vadd.xlane.f32.xlu0 %v504
    %v506 = vpop.xlane.xlu0 %505
    %v507 = vmax.f32 %v461, 1e-24
    %v508 = vmax.f32 %v464, 1e-24
    %v509 = vmax.f32 %v467, 1e-24
    %v510 = vmax.f32 %v470, 1e-24
    %v511 = vmax.f32 %v473, 1e-24
    %v512 = vmax.f32 %v476, 1e-24
    %v513 = vmax.f32 %v479, 1e-24
    %v514 = vmax.f32 %v482, 1e-24
    %v515 = vmax.f32 %v485, 1e-24
    %v516 = vmax.f32 %v488, 1e-24
    %v517 = vmax.f32 %v491, 1e-24
    %v518 = vmax.f32 %v494, 1e-24
    %v519 = vmax.f32 %v497, 1e-24
    %v520 = vmax.f32 %v500, 1e-24
    %v521 = vmax.f32 %v503, 1e-24
    %v522 = vmax.f32 %v506, 1e-24
    %v523 = vrsqrt.pop %v507
    %v524 = vrsqrt.pop %v508
    %v525 = vrsqrt.pop %v509
    %v526 = vrsqrt.pop %v510
    %v527 = vrsqrt.pop %v511
    %v528 = vrsqrt.pop %v512
    %v529 = vrsqrt.pop %v513
    %v530 = vrsqrt.pop %v514
    %v531 = vrsqrt.pop %v515
    %v532 = vrsqrt.pop %v516
    %v533 = vrsqrt.pop %v517
    %v534 = vrsqrt.pop %v518
    %v535 = vrsqrt.pop %v519
    %v536 = vrsqrt.pop %v520
    %v537 = vrsqrt.pop %v521
    %v538 = vrsqrt.pop %v522
    %v539 = vmul.f32 %v523, 0.5
    %v540 = vmul.f32 %v524, 0.5
    %v541 = vmul.f32 %v525, 0.5
    %v542 = vmul.f32 %v526, 0.5
    %v543 = vmul.f32 %v527, 0.5
    %v544 = vmul.f32 %v528, 0.5
    %v545 = vmul.f32 %v529, 0.5
    %v546 = vmul.f32 %v530, 0.5
    %v547 = vmul.f32 %v531, 0.5
    %v548 = vmul.f32 %v532, 0.5
    %v549 = vmul.f32 %v533, 0.5
    %v550 = vmul.f32 %v534, 0.5
    %v551 = vmul.f32 %v535, 0.5
    %v552 = vmul.f32 %v536, 0.5
    %v553 = vmul.f32 %v537, 0.5
    %v554 = vmul.f32 %v538, 0.5
    %v555 = vmul.f32 %v427, %v539
    %v556 = vmul.f32 %v428, %v540
    %v557 = vmul.f32 %v429, %v541
    %v558 = vmul.f32 %v430, %v542
    %v559 = vmul.f32 %v431, %v543
    %v560 = vmul.f32 %v432, %v544
    %v561 = vmul.f32 %v433, %v545
    %v562 = vmul.f32 %v434, %v546
    %v563 = vmul.f32 %v435, %v547
    %v564 = vmul.f32 %v436, %v548
    %v565 = vmul.f32 %v437, %v549
    %v566 = vmul.f32 %v438, %v550
    %v567 = vmul.f32 %v439, %v551
    %v568 = vmul.f32 %v440, %v552
    %v569 = vmul.f32 %v441, %v553
    %v570 = vmul.f32 %v442, %v554
    %587 = vrot.lane.b32.xlu0 %v555, 64
    %v588 = vpop.permute.xlu0 %587
    %589 = vrot.lane.b32.xlu0 %v556, 64
    %v590 = vpop.permute.xlu0 %589
    %591 = vrot.lane.b32.xlu0 %v557, 64
    %v592 = vpop.permute.xlu0 %591
    %593 = vrot.lane.b32.xlu0 %v558, 64
    %v594 = vpop.permute.xlu0 %593
    %595 = vrot.lane.b32.xlu0 %v559, 64
    %v596 = vpop.permute.xlu0 %595
    %597 = vrot.lane.b32.xlu0 %v560, 64
    %v598 = vpop.permute.xlu0 %597
    %599 = vrot.lane.b32.xlu0 %v561, 64
    %v600 = vpop.permute.xlu0 %599
    %601 = vrot.lane.b32.xlu0 %v562, 64
    %v602 = vpop.permute.xlu0 %601
    %603 = vrot.lane.b32.xlu0 %v563, 64
    %v604 = vpop.permute.xlu0 %603
    %605 = vrot.lane.b32.xlu0 %v564, 64
    %v606 = vpop.permute.xlu0 %605
    %607 = vrot.lane.b32.xlu0 %v565, 64
    %v608 = vpop.permute.xlu0 %607
    %609 = vrot.lane.b32.xlu0 %v566, 64
    %v610 = vpop.permute.xlu0 %609
    %611 = vrot.lane.b32.xlu0 %v567, 64
    %v612 = vpop.permute.xlu0 %611
    %613 = vrot.lane.b32.xlu0 %v568, 64
    %v614 = vpop.permute.xlu0 %613
    %615 = vrot.lane.b32.xlu0 %v569, 64
    %v616 = vpop.permute.xlu0 %615
    %617 = vrot.lane.b32.xlu0 %v570, 64
    %v618 = vpop.permute.xlu0 %617
    %vm635 = vcmask 785920
    %636 = vst.msk [vmem:[#allocation2] sm:$0xff] %vm635, %v588
    %637 = vst.msk [vmem:[#allocation2 + $0x8] sm:$0xff] %vm635, %v590
    %638 = vst.msk [vmem:[#allocation2 + $0x10] sm:$0xff] %vm635, %v592
    %639 = vst.msk [vmem:[#allocation2 + $0x18] sm:$0xff] %vm635, %v594
    %640 = vst.msk [vmem:[#allocation2 + $0x20] sm:$0xff] %vm635, %v596
    %641 = vst.msk [vmem:[#allocation2 + $0x28] sm:$0xff] %vm635, %v598
    %642 = vst.msk [vmem:[#allocation2 + $0x30] sm:$0xff] %vm635, %v600
    %643 = vst.msk [vmem:[#allocation2 + $0x38] sm:$0xff] %vm635, %v602
    %644 = vst.msk [vmem:[#allocation2 + $0x40] sm:$0xff] %vm635, %v604
    %645 = vst.msk [vmem:[#allocation2 + $0x48] sm:$0xff] %vm635, %v606
    %646 = vst.msk [vmem:[#allocation2 + $0x50] sm:$0xff] %vm635, %v608
    %647 = vst.msk [vmem:[#allocation2 + $0x58] sm:$0xff] %vm635, %v610
    %648 = vst.msk [vmem:[#allocation2 + $0x60] sm:$0xff] %vm635, %v612
    %649 = vst.msk [vmem:[#allocation2 + $0x68] sm:$0xff] %vm635, %v614
    %650 = vst.msk [vmem:[#allocation2 + $0x70] sm:$0xff] %vm635, %v616
    %651 = vst.msk [vmem:[#allocation2 + $0x78] sm:$0xff] %vm635, %v618
    %v652 = vlaneseq
    %v653 = vshrl.u32 %v652, 7
    %v654 = vsub.s32 3, %v653
    %v655 = vrot.slane %v28, %v654
    %v656 = vmul.f32 %v12, %v655
    %v657 = vmul.f32 %v13, %v655
    %v658 = vmul.f32 %v14, %v655
    %v659 = vmul.f32 %v15, %v655
    %v660 = vmul.f32 %v16, %v655
    %v661 = vmul.f32 %v17, %v655
    %v662 = vmul.f32 %v18, %v655
    %v663 = vmul.f32 %v19, %v655
    %v664 = vmul.f32 %v20, %v655
    %v665 = vmul.f32 %v21, %v655
    %v666 = vmul.f32 %v22, %v655
    %v667 = vmul.f32 %v23, %v655
    %v668 = vmul.f32 %v24, %v655
    %v669 = vmul.f32 %v25, %v655
    %v670 = vmul.f32 %v26, %v655
    %v671 = vmul.f32 %v27, %v655
    %v672 = vmul.f32 %v656, %v656
    %v673 = vmul.f32 %v657, %v657
    %v674 = vmul.f32 %v658, %v658
    %v675 = vmul.f32 %v659, %v659
    %v676 = vmul.f32 %v660, %v660
    %v677 = vmul.f32 %v661, %v661
    %v678 = vmul.f32 %v662, %v662
    %v679 = vmul.f32 %v663, %v663
    %v680 = vmul.f32 %v664, %v664
    %v681 = vmul.f32 %v665, %v665
    %v682 = vmul.f32 %v666, %v666
    %v683 = vmul.f32 %v667, %v667
    %v684 = vmul.f32 %v668, %v668
    %v685 = vmul.f32 %v669, %v669
    %v686 = vmul.f32 %v670, %v670
    %v687 = vmul.f32 %v671, %v671
    %v688 = vsel %vm65, %v672, 0.0
    %689 = vadd.xlane.f32.xlu0 %v688
    %v690 = vpop.xlane.xlu0 %689
    %v691 = vsel %vm65, %v673, 0.0
    %692 = vadd.xlane.f32.xlu0 %v691
    %v693 = vpop.xlane.xlu0 %692
    %v694 = vsel %vm65, %v674, 0.0
    %695 = vadd.xlane.f32.xlu0 %v694
    %v696 = vpop.xlane.xlu0 %695
    %v697 = vsel %vm65, %v675, 0.0
    %698 = vadd.xlane.f32.xlu0 %v697
    %v699 = vpop.xlane.xlu0 %698
    %v700 = vsel %vm65, %v676, 0.0
    %701 = vadd.xlane.f32.xlu0 %v700
    %v702 = vpop.xlane.xlu0 %701
    %v703 = vsel %vm65, %v677, 0.0
    %704 = vadd.xlane.f32.xlu0 %v703
    %v705 = vpop.xlane.xlu0 %704
    %v706 = vsel %vm65, %v678, 0.0
    %707 = vadd.xlane.f32.xlu0 %v706
    %v708 = vpop.xlane.xlu0 %707
    %v709 = vsel %vm65, %v679, 0.0
    %710 = vadd.xlane.f32.xlu0 %v709
    %v711 = vpop.xlane.xlu0 %710
    %v712 = vsel %vm65, %v680, 0.0
    %713 = vadd.xlane.f32.xlu0 %v712
    %v714 = vpop.xlane.xlu0 %713
    %v715 = vsel %vm65, %v681, 0.0
    %716 = vadd.xlane.f32.xlu0 %v715
    %v717 = vpop.xlane.xlu0 %716
    %v718 = vsel %vm65, %v682, 0.0
    %719 = vadd.xlane.f32.xlu0 %v718
    %v720 = vpop.xlane.xlu0 %719
    %v721 = vsel %vm65, %v683, 0.0
    %722 = vadd.xlane.f32.xlu0 %v721
    %v723 = vpop.xlane.xlu0 %722
    %v724 = vsel %vm65, %v684, 0.0
    %725 = vadd.xlane.f32.xlu0 %v724
    %v726 = vpop.xlane.xlu0 %725
    %v727 = vsel %vm65, %v685, 0.0
    %728 = vadd.xlane.f32.xlu0 %v727
    %v729 = vpop.xlane.xlu0 %728
    %v730 = vsel %vm65, %v686, 0.0
    %731 = vadd.xlane.f32.xlu0 %v730
    %v732 = vpop.xlane.xlu0 %731
    %v733 = vsel %vm65, %v687, 0.0
    %734 = vadd.xlane.f32.xlu0 %v733
    %v735 = vpop.xlane.xlu0 %734
    %v736 = vmax.f32 %v690, 1e-24
    %v737 = vmax.f32 %v693, 1e-24
    %v738 = vmax.f32 %v696, 1e-24
    %v739 = vmax.f32 %v699, 1e-24
    %v740 = vmax.f32 %v702, 1e-24
    %v741 = vmax.f32 %v705, 1e-24
    %v742 = vmax.f32 %v708, 1e-24
    %v743 = vmax.f32 %v711, 1e-24
    %v744 = vmax.f32 %v714, 1e-24
    %v745 = vmax.f32 %v717, 1e-24
    %v746 = vmax.f32 %v720, 1e-24
    %v747 = vmax.f32 %v723, 1e-24
    %v748 = vmax.f32 %v726, 1e-24
    %v749 = vmax.f32 %v729, 1e-24
    %v750 = vmax.f32 %v732, 1e-24
    %v751 = vmax.f32 %v735, 1e-24
    %v752 = vrsqrt.pop %v736
    %v753 = vrsqrt.pop %v737
    %v754 = vrsqrt.pop %v738
    %v755 = vrsqrt.pop %v739
    %v756 = vrsqrt.pop %v740
    %v757 = vrsqrt.pop %v741
    %v758 = vrsqrt.pop %v742
    %v759 = vrsqrt.pop %v743
    %v760 = vrsqrt.pop %v744
    %v761 = vrsqrt.pop %v745
    %v762 = vrsqrt.pop %v746
    %v763 = vrsqrt.pop %v747
    %v764 = vrsqrt.pop %v748
    %v765 = vrsqrt.pop %v749
    %v766 = vrsqrt.pop %v750
    %v767 = vrsqrt.pop %v751
    %v768 = vmul.f32 %v752, 0.5
    %v769 = vmul.f32 %v753, 0.5
    %v770 = vmul.f32 %v754, 0.5
    %v771 = vmul.f32 %v755, 0.5
    %v772 = vmul.f32 %v756, 0.5
    %v773 = vmul.f32 %v757, 0.5
    %v774 = vmul.f32 %v758, 0.5
    %v775 = vmul.f32 %v759, 0.5
    %v776 = vmul.f32 %v760, 0.5
    %v777 = vmul.f32 %v761, 0.5
    %v778 = vmul.f32 %v762, 0.5
    %v779 = vmul.f32 %v763, 0.5
    %v780 = vmul.f32 %v764, 0.5
    %v781 = vmul.f32 %v765, 0.5
    %v782 = vmul.f32 %v766, 0.5
    %v783 = vmul.f32 %v767, 0.5
    %v784 = vmul.f32 %v656, %v768
    %v785 = vmul.f32 %v657, %v769
    %v786 = vmul.f32 %v658, %v770
    %v787 = vmul.f32 %v659, %v771
    %v788 = vmul.f32 %v660, %v772
    %v789 = vmul.f32 %v661, %v773
    %v790 = vmul.f32 %v662, %v774
    %v791 = vmul.f32 %v663, %v775
    %v792 = vmul.f32 %v664, %v776
    %v793 = vmul.f32 %v665, %v777
    %v794 = vmul.f32 %v666, %v778
    %v795 = vmul.f32 %v667, %v779
    %v796 = vmul.f32 %v668, %v780
    %v797 = vmul.f32 %v669, %v781
    %v798 = vmul.f32 %v670, %v782
    %v799 = vmul.f32 %v671, %v783
    %816 = vrot.lane.b32.xlu0 %v784, 96
    %v817 = vpop.permute.xlu0 %816
    %818 = vrot.lane.b32.xlu0 %v785, 96
    %v819 = vpop.permute.xlu0 %818
    %820 = vrot.lane.b32.xlu0 %v786, 96
    %v821 = vpop.permute.xlu0 %820
    %822 = vrot.lane.b32.xlu0 %v787, 96
    %v823 = vpop.permute.xlu0 %822
    %824 = vrot.lane.b32.xlu0 %v788, 96
    %v825 = vpop.permute.xlu0 %824
    %826 = vrot.lane.b32.xlu0 %v789, 96
    %v827 = vpop.permute.xlu0 %826
    %828 = vrot.lane.b32.xlu0 %v790, 96
    %v829 = vpop.permute.xlu0 %828
    %830 = vrot.lane.b32.xlu0 %v791, 96
    %v831 = vpop.permute.xlu0 %830
    %832 = vrot.lane.b32.xlu0 %v792, 96
    %v833 = vpop.permute.xlu0 %832
    %834 = vrot.lane.b32.xlu0 %v793, 96
    %v835 = vpop.permute.xlu0 %834
    %836 = vrot.lane.b32.xlu0 %v794, 96
    %v837 = vpop.permute.xlu0 %836
    %838 = vrot.lane.b32.xlu0 %v795, 96
    %v839 = vpop.permute.xlu0 %838
    %840 = vrot.lane.b32.xlu0 %v796, 96
    %v841 = vpop.permute.xlu0 %840
    %842 = vrot.lane.b32.xlu0 %v797, 96
    %v843 = vpop.permute.xlu0 %842
    %844 = vrot.lane.b32.xlu0 %v798, 96
    %v845 = vpop.permute.xlu0 %844
    %846 = vrot.lane.b32.xlu0 %v799, 96
    %v847 = vpop.permute.xlu0 %846
    %vm864 = vcmask 1048320
    %865 = vst.msk [vmem:[#allocation2] sm:$0xff] %vm864, %v817
    %866 = vst.msk [vmem:[#allocation2 + $0x8] sm:$0xff] %vm864, %v819
    %867 = vst.msk [vmem:[#allocation2 + $0x10] sm:$0xff] %vm864, %v821
    %868 = vst.msk [vmem:[#allocation2 + $0x18] sm:$0xff] %vm864, %v823
    %869 = vst.msk [vmem:[#allocation2 + $0x20] sm:$0xff] %vm864, %v825
    %870 = vst.msk [vmem:[#allocation2 + $0x28] sm:$0xff] %vm864, %v827
    %871 = vst.msk [vmem:[#allocation2 + $0x30] sm:$0xff] %vm864, %v829
    %872 = vst.msk [vmem:[#allocation2 + $0x38] sm:$0xff] %vm864, %v831
    %873 = vst.msk [vmem:[#allocation2 + $0x40] sm:$0xff] %vm864, %v833
    %874 = vst.msk [vmem:[#allocation2 + $0x48] sm:$0xff] %vm864, %v835
    %875 = vst.msk [vmem:[#allocation2 + $0x50] sm:$0xff] %vm864, %v837
    %876 = vst.msk [vmem:[#allocation2 + $0x58] sm:$0xff] %vm864, %v839
    %877 = vst.msk [vmem:[#allocation2 + $0x60] sm:$0xff] %vm864, %v841
    %878 = vst.msk [vmem:[#allocation2 + $0x68] sm:$0xff] %vm864, %v843
    %879 = vst.msk [vmem:[#allocation2 + $0x70] sm:$0xff] %vm864, %v845
    %880 = vst.msk [vmem:[#allocation2 + $0x78] sm:$0xff] %vm864, %v847
    // Predicated region
    $region10: #{tpu_custom_call.1} parent=1 // pred_check
      _
    $region11: #{tpu_custom_call.1} parent=1 // pred_check_branch
      %882 = sbr.rel (0) target = $region13
    $region12: #{tpu_custom_call.1} parent=1 // pred_region
      %s884 = ssub.s32 2048, 2048
      %885 = vsyncadd [#allocation3], %s884
      %s886 = sshll.u32 [#allocation2], 4
      %s887 = int_to_ptr.vmem [resolvable:$true] %s886
      %892 = dma.vmem_to_hbm [thread:$0]  %s887, 2048, %s2, [#allocation3], 128, 128, 8
    $region13: #{tpu_custom_call.1} parent=1 // pred_fallthru
      _
    // Predicated region
    $region14: #{tpu_custom_call.1} parent=1 // pred_check
      _
    $region15: #{tpu_custom_call.1} parent=1 // pred_check_branch
      %894 = sbr.rel (0) target = $region17
    $region16: #{tpu_custom_call.1} parent=1 // pred_region
      %895 = dma.done [#allocation3], 2048
    $region17: #{tpu_custom_call.1} parent=1 // pred_fallthru
      _
    %896 = vsyncpa [#allocation3], 1

</llo_original>
